<compile_context>
chip_gen: v7x
topology: tpu7x:2x2x1
jax: 0.10.0
libtpu: 0.0.40
codegen_flags: <defaults>
</compile_context>

<pallas_src>
import math

import jax
import jax.numpy as jnp
from jax import lax
from jax.experimental import pallas as pl
from jax.experimental.pallas import tpu as pltpu


# ------------------------------ GCN kernel -----------------------------------
def gcn_kernel(adj_ref, x_ref, wg_ref, bg_ref, out_ref):
    # out_tile = relu(adj_tile @ (x @ Wg) + b), bf16 inputs / f32 accumulation.
    xw = jnp.dot(x_ref[...], wg_ref[...], preferred_element_type=jnp.float32)
    acc = jnp.dot(adj_ref[...], xw.astype(jnp.bfloat16),
                  preferred_element_type=jnp.float32)
    out_ref[...] = jnp.maximum(acc + bg_ref[...], 0.0)


def _pick_row_tile(n):
    for t in (512, 256, 128):
        if n >= 2 * t and n % t == 0:
            return t
    return n  # small graphs: single full-height tile


# ------------------------------ GRU kernel -----------------------------------
def _gru_layer(inp, wih_ref, whh_ref, bih_ref, bhh_ref, gi_ref, seq_ref):
    """PyTorch-semantics unidirectional GRU layer, h0 = 0, lane-padded gates.

    inp      [N, Hp]   bf16 value (N = time steps, Hp = 128-padded hidden)
    wih_ref  [Hp, 3Hp] bf16 ref, fused gates (r | z | n), each lane-aligned
    whh_ref  [Hp, 3Hp] bf16 ref
    bih_ref  [1, 3Hp]  f32 ref
    bhh_ref  [1, 3Hp]  f32 ref
    gi_ref   [N, 3Hp]  f32 VMEM scratch (fused input projections, all steps)
    seq_ref  [N, Hp]   f32 VMEM ref, per-step hidden states written here
    """
    n_steps, hp = seq_ref.shape

    # One fused bf16 input-projection matmul for every timestep -> scratch.
    gi_ref[...] = (jnp.dot(inp, wih_ref[...], preferred_element_type=jnp.float32)
                   + bih_ref[...])

    # Recurrent operands held live across the loop (bf16 halves the footprint).
    # TODO(synk): use pltpu.matmul_push_rhs/matmul_acc_lhs to keep w_hh in MXU
    # staging registers across the recurrence.
    whh = whh_ref[...]
    bhh = bhh_ref[...]

    group = 8                     # one aligned (8, Hp) store per group
    n_groups = n_steps // group

    def group_step(g, h_prev):
        base = pl.multiple_of(g * group, group)
        h = h_prev
        rows = []
        for j in range(group):    # unrolled: scheduler overlap window
            gi = gi_ref[pl.ds(base + j, 1), :]                       # [1, 3Hp]
            gh = jnp.dot(h.astype(jnp.bfloat16), whh,
                         preferred_element_type=jnp.float32) + bhh
            # 128-lane-aligned gate slices (r | z | n).
            r = jax.nn.sigmoid(gi[:, 0 * hp:1 * hp] + gh[:, 0 * hp:1 * hp])
            z = jax.nn.sigmoid(gi[:, 1 * hp:2 * hp] + gh[:, 1 * hp:2 * hp])
            n = jnp.tanh(gi[:, 2 * hp:3 * hp] + r * gh[:, 2 * hp:3 * hp])
            h = (1.0 - z) * n + z * h
            rows.append(h)
        # Batched, sublane/lane-dense hidden-state writeback.
        seq_ref[pl.ds(base, group), :] = jnp.concatenate(rows, axis=0)
        return h

    h0 = jnp.zeros((1, hp), jnp.float32)
    lax.fori_loop(0, n_groups, group_step, h0)


def gru_stack_kernel(h_ref, wih1_ref, whh1_ref, bih1_ref, bhh1_ref,
                     wih2_ref, whh2_ref, bih2_ref, bhh2_ref,
                     out_ref, gi_ref, seq1_ref):
    # Layer 1: GCN output -> seq1 scratch.
    _gru_layer(h_ref[...], wih1_ref, whh1_ref, bih1_ref, bhh1_ref,
               gi_ref, seq1_ref)
    # Layer 2 streams straight from the layer-1 scratch into the output ref.
    _gru_layer(seq1_ref[...].astype(jnp.bfloat16),
               wih2_ref, whh2_ref, bih2_ref, bhh2_ref, gi_ref, out_ref)


# ------------------------------ host wrapper ---------------------------------
def _pad_gru_operands(w_ih, w_hh, b_ih, b_hh, h, hp):
    """Lane-align fused r|z|n gates: [H,3H]->[Hp,3Hp], [1,3H]->[1,3Hp]."""
    def pad_w(w):
        out = jnp.zeros((hp, 3 * hp), jnp.float32)
        for k in range(3):
            out = out.at[:h, k * hp:k * hp + h].set(w[:, k * h:(k + 1) * h])
        return out

    def pad_b(b):
        out = jnp.zeros((1, 3 * hp), jnp.float32)
        for k in range(3):
            out = out.at[:, k * hp:k * hp + h].set(b[:, k * h:(k + 1) * h])
        return out

    return (pad_w(w_ih).astype(jnp.bfloat16), pad_w(w_hh).astype(jnp.bfloat16),
            pad_b(b_ih), pad_b(b_hh))


def gcn_bigru_forward(x, adj_norm, params):
    n_nodes, in_dim = x.shape
    hidden = params["w_gcn"].shape[1]
    hp = ((hidden + 127) // 128) * 128        # lane-padded hidden dim
    npad = ((n_nodes + 7) // 8) * 8           # sublane-padded time dim

    # ---- GCNConv: row-tiled, pipelined, megacore-parallel on v7x ----
    tm = _pick_row_tile(n_nodes)
    wg_pad = jnp.zeros((in_dim, hp), jnp.float32).at[:, :hidden].set(params["w_gcn"])
    bg_pad = jnp.zeros((1, hp), jnp.float32).at[:, :hidden].set(params["b_gcn"])

    h = pl.pallas_call(
        gcn_kernel,
        out_shape=jax.ShapeDtypeStruct((n_nodes, hp), jnp.float32),
        grid_spec=pltpu.PrefetchScalarGridSpec(
            num_scalar_prefetch=0,
            grid=(n_nodes // tm,),
            in_specs=[
                pl.BlockSpec((tm, n_nodes), lambda i: (i, 0)),   # adjacency rows
                pl.BlockSpec((n_nodes, in_dim), lambda i: (0, 0)),
                pl.BlockSpec((in_dim, hp), lambda i: (0, 0)),
                pl.BlockSpec((1, hp), lambda i: (0, 0)),
            ],
            out_specs=pl.BlockSpec((tm, hp), lambda i: (i, 0)),
        ),
        compiler_params=pltpu.CompilerParams(
            dimension_semantics=("parallel",)),
    )(adj_norm.astype(jnp.bfloat16), x.astype(jnp.bfloat16),
      wg_pad.astype(jnp.bfloat16), bg_pad)

    # Pad the time/node axis to a multiple of 8 (extra trailing steps are
    # causal garbage and sliced away below).
    h = jnp.pad(h, ((0, npad - n_nodes), (0, 0))).astype(jnp.bfloat16)

    # ---- GRU stack: fused, lane-aligned, bf16 operands ----
    wih1, whh1, bih1, bhh1 = _pad_gru_operands(
        params["w_ih1"], params["w_hh1"], params["b_ih1"], params["b_hh1"],
        hidden, hp)
    wih2, whh2, bih2, bhh2 = _pad_gru_operands(
        params["w_ih2"], params["w_hh2"], params["b_ih2"], params["b_hh2"],
        hidden, hp)

    gru_args = (h, wih1, whh1, bih1, bhh1, wih2, whh2, bih2, bhh2)
    in_specs = [pl.BlockSpec(a.shape, lambda i: (0, 0)) for a in gru_args]

    seq = pl.pallas_call(
        gru_stack_kernel,
        out_shape=jax.ShapeDtypeStruct((npad, hp), jnp.float32),
        grid_spec=pltpu.PrefetchScalarGridSpec(
            num_scalar_prefetch=0,
            grid=(1,),
            in_specs=in_specs,
            out_specs=pl.BlockSpec((npad, hp), lambda i: (0, 0)),
            scratch_shapes=[
                pltpu.VMEM((npad, 3 * hp), jnp.float32),   # fused gi scratch
                pltpu.VMEM((npad, hp), jnp.float32),       # layer-1 hidden seq
            ],
        ),
        compiler_params=pltpu.CompilerParams(
            dimension_semantics=("arbitrary",)),
    )(*gru_args)

    # Classifier Linear(H, out_dim) + final .squeeze() in plain XLA.
    out = jnp.dot(seq[:n_nodes, :hidden], params["w_cls"]) + params["b_cls"]
    return jnp.squeeze(out)


def normalized_adjacency(edge_index, num_nodes):
    """Dense D^-1/2 (A + I) D^-1/2 with unit edge weights (PyG GCNConv default)."""
    src = edge_index[0]
    dst = edge_index[1]
    a = jnp.zeros((num_nodes, num_nodes), jnp.float32)
    a = a.at[dst, src].set(1.0)                       # message flows src -> dst
    a = a + jnp.eye(num_nodes, dtype=jnp.float32)     # add self loops
    deg = jnp.sum(a, axis=1)
    d_inv_sqrt = jnp.where(deg > 0.0, 1.0 / jnp.sqrt(deg), 0.0)
    return d_inv_sqrt[:, None] * a * d_inv_sqrt[None, :]


def init_params(key, in_dim, hidden, out_dim):
    """Deterministic synthetic parameters (shapes follow the torch __init__),
    with GRU gate weights fused as [H, 3H] (gate order r | z | n)."""
    ks = jax.random.split(key, 12)

    def u(k, shape, bound):
        return jax.random.uniform(k, shape, jnp.float32, -bound, bound)

    glorot = math.sqrt(6.0 / (in_dim + hidden))
    inv_sqrt_h = 1.0 / math.sqrt(hidden)

    params = {
        # GCNConv: lin.weight [hidden, in_dim] -> stored transposed [in, hidden]
        "w_gcn": u(ks[0], (in_dim, hidden), glorot),
        "b_gcn": jnp.zeros((1, hidden), jnp.float32),
        # classifier: nn.Linear(hidden, out_dim)
        "w_cls": u(ks[9], (hidden, out_dim), inv_sqrt_h),
        "b_cls": u(ks[10], (1, out_dim), inv_sqrt_h),
    }
    # Two nn.GRU(hidden, hidden) layers: torch weight_ih/_hh are (3H, H);
    # stored here fused & transposed as [H, 3H], biases as [1, 3H].
    for layer, koff in ((1, 1), (2, 5)):
        params[f"w_ih{layer}"] = u(ks[koff + 0], (hidden, 3 * hidden), inv_sqrt_h)
        params[f"w_hh{layer}"] = u(ks[koff + 1], (hidden, 3 * hidden), inv_sqrt_h)
        params[f"b_ih{layer}"] = u(ks[koff + 2], (1, 3 * hidden), inv_sqrt_h)
        params[f"b_hh{layer}"] = u(ks[koff + 3], (1, 3 * hidden), inv_sqrt_h)
    return params


# ----------------------------- pure-JAX reference -----------------------------
def _gru_layer_ref(inp, w_ih, w_hh, b_ih, b_hh):
    hidden = w_hh.shape[0]

    def step(h_prev, x_t):
        gi = x_t @ w_ih + b_ih[0]
        gh = h_prev @ w_hh + b_hh[0]
        i_r, i_z, i_n = jnp.split(gi, 3)
        h_r, h_z, h_n = jnp.split(gh, 3)
        r = jax.nn.sigmoid(i_r + h_r)
        z = jax.nn.sigmoid(i_z + h_z)
        n = jnp.tanh(i_n + r * h_n)
        h_new = (1.0 - z) * n + z * h_prev
        return h_new, h_new

    h0 = jnp.zeros((hidden,), jnp.float32)
    _, seq = lax.scan(step, h0, inp)
    return seq


def gcn_bigru_reference(x, adj_norm, params):
    h = jnp.maximum(adj_norm @ (x @ params["w_gcn"]) + params["b_gcn"], 0.0)
    h1 = _gru_layer_ref(h, params["w_ih1"], params["w_hh1"],
                        params["b_ih1"], params["b_hh1"])
    h2 = _gru_layer_ref(h1, params["w_ih2"], params["w_hh2"],
                        params["b_ih2"], params["b_hh2"])
    return jnp.squeeze(h2 @ params["w_cls"] + params["b_cls"])


if __name__ == "__main__":
    N, IN_DIM, HIDDEN, OUT_DIM = 16, 4, 32, 1

    key = jax.random.PRNGKey(0)
    kx, kp = jax.random.split(key)

    x = jax.random.normal(kx, (N, IN_DIM), jnp.float32)

    # Undirected ring graph (both directions, no self loops): edge_index [2, 2N]
    src = jnp.arange(N, dtype=jnp.int32)
    dst = (src + 1) % N
    edge_index = jnp.stack([jnp.concatenate([src, dst]),
                            jnp.concatenate([dst, src])], axis=0)

    adj_norm = normalized_adjacency(edge_index, N)
    params = init_params(kp, IN_DIM, HIDDEN, OUT_DIM)

    out = gcn_bigru_forward(x, adj_norm, params)
    jax.block_until_ready(out)
    assert out.shape == (N,)

    ref = gcn_bigru_reference(x, adj_norm, params)
    max_err = float(jnp.max(jnp.abs(out - ref)))
    assert max_err < 1e-1, f"mismatch vs pure-JAX reference: {max_err}"

    print("KERNEL_OK")
</pallas_src>

<mosaic_0001>
module attributes {stable_mosaic.version = 11 : i64} {
  func.func @gcn_kernel(%arg0: i32, %arg1: memref<16x16xbf16, #tpu.memory_space<vmem>>, %arg2: memref<16x4xbf16, #tpu.memory_space<vmem>>, %arg3: memref<4x128xbf16, #tpu.memory_space<vmem>>, %arg4: memref<1x128xf32, #tpu.memory_space<vmem>>, %arg5: memref<16x128xf32, #tpu.memory_space<vmem>>) attributes {dimension_semantics = [#tpu.dimension_semantics<parallel>], iteration_bounds = array<i64: 1>, scalar_prefetch = 0 : i64, scratch_operands = 0 : i64, tpu.core_type = #tpu.core_type<tc>, window_params = [{transform_indices = @transform_0, window_bounds = array<i64: 16, 16>}, {pipeline_mode = #tpu.pipeline_mode<synchronous>, transform_indices = @transform_1, window_bounds = array<i64: 16, 4>}, {pipeline_mode = #tpu.pipeline_mode<synchronous>, transform_indices = @transform_2, window_bounds = array<i64: 4, 128>}, {pipeline_mode = #tpu.pipeline_mode<synchronous>, transform_indices = @transform_3, window_bounds = array<i64: 1, 128>}, {transform_indices = @transform_4, window_bounds = array<i64: 16, 128>}]} {
    %c0 = arith.constant 0 : index
    %c0_0 = arith.constant 0 : index
    %0 = vector.load %arg2[%c0, %c0_0] : memref<16x4xbf16, #tpu.memory_space<vmem>>, vector<16x4xbf16>
    %c0_1 = arith.constant 0 : index
    %c0_2 = arith.constant 0 : index
    %1 = vector.load %arg3[%c0_1, %c0_2] : memref<4x128xbf16, #tpu.memory_space<vmem>>, vector<4x128xbf16>
    %cst = arith.constant dense<0.000000e+00> : vector<16x128xf32>
    %2 = tpu.matmul %0, %1, %cst {dimension_numbers = #tpu.dot_dimension_numbers<[1], [0], [0], [1], [0, 0, 1, 1], [], []>} : vector<16x4xbf16>, vector<4x128xbf16>, vector<16x128xf32> -> vector<16x128xf32>
    %c0_3 = arith.constant 0 : index
    %c0_4 = arith.constant 0 : index
    %3 = vector.load %arg1[%c0_3, %c0_4] : memref<16x16xbf16, #tpu.memory_space<vmem>>, vector<16x16xbf16>
    %4 = arith.truncf %2 : vector<16x128xf32> to vector<16x128xbf16>
    %cst_5 = arith.constant dense<0.000000e+00> : vector<16x128xf32>
    %5 = tpu.matmul %3, %4, %cst_5 {dimension_numbers = #tpu.dot_dimension_numbers<[1], [0], [0], [1], [0, 0, 1, 1], [], []>} : vector<16x16xbf16>, vector<16x128xbf16>, vector<16x128xf32> -> vector<16x128xf32>
    %c0_6 = arith.constant 0 : index
    %c0_7 = arith.constant 0 : index
    %6 = vector.load %arg4[%c0_6, %c0_7] : memref<1x128xf32, #tpu.memory_space<vmem>>, vector<1x128xf32>
    %7 = vector.broadcast %6 : vector<1x128xf32> to vector<16x128xf32>
    %8 = arith.addf %5, %7 : vector<16x128xf32>
    %cst_8 = arith.constant 0.000000e+00 : f32
    %9 = vector.broadcast %cst_8 : f32 to vector<16x128xf32>
    %10 = arith.maximumf %8, %9 : vector<16x128xf32>
    %c0_9 = arith.constant 0 : index
    %c0_10 = arith.constant 0 : index
    %11 = vector.load %arg5[%c0_9, %c0_10] : memref<16x128xf32, #tpu.memory_space<vmem>>, vector<16x128xf32>
    tpu.vector_store %arg5[%c0_9, %c0_10], %10 {strides = array<i32>} : memref<16x128xf32, #tpu.memory_space<vmem>>, vector<16x128xf32>,
    return
  }
  func.func @transform_0(%arg0: i32) -> (i32, i32) {
    %c0_i32 = arith.constant 0 : i32
    %c0_i32_0 = arith.constant 0 : i32
    return %arg0, %c0_i32 : i32, i32
  }
  func.func @transform_1(%arg0: i32) -> (i32, i32) {
    %c0_i32 = arith.constant 0 : i32
    %c0_i32_0 = arith.constant 0 : i32
    %c0_i32_1 = arith.constant 0 : i32
    return %c0_i32, %c0_i32_0 : i32, i32
  }
  func.func @transform_2(%arg0: i32) -> (i32, i32) {
    %c0_i32 = arith.constant 0 : i32
    %c0_i32_0 = arith.constant 0 : i32
    %c0_i32_1 = arith.constant 0 : i32
    return %c0_i32, %c0_i32_0 : i32, i32
  }
  func.func @transform_3(%arg0: i32) -> (i32, i32) {
    %c0_i32 = arith.constant 0 : i32
    %c0_i32_0 = arith.constant 0 : i32
    %c0_i32_1 = arith.constant 0 : i32
    return %c0_i32, %c0_i32_0 : i32, i32
  }
  func.func @transform_4(%arg0: i32) -> (i32, i32) {
    %c0_i32 = arith.constant 0 : i32
    %c0_i32_0 = arith.constant 0 : i32
    return %arg0, %c0_i32 : i32, i32
  }
}

</mosaic_0001>

<llo_original>
// kernel: tpu_custom_call.1
$region0: #{tpu_custom_call.1}
  #allocation0 [shape = 'u32[]', space=smem, size = 0x4, offset = 0x4, fixed_abs, tag = 'smem constant byte address 0x4 - core index']
  #allocation1 [shape = 'u32[144,128]{1,0:T(1,128)}', space=vmem, size = 0x12000, scoped, tag = 'internal scratch']
  %s0 = inlined_call_operand.vmem [shape: bf16[16,16], index: 0, kind: input, shape index: {}]
  %s1 = inlined_call_operand.vmem [shape: bf16[16,4], index: 1, kind: input, shape index: {}]
  %s2 = inlined_call_operand.vmem [shape: bf16[4,128], index: 2, kind: input, shape index: {}]
  %s3 = inlined_call_operand.vmem [shape: f32[1,128], index: 3, kind: input, shape index: {}]
  %s4 = inlined_call_operand.hbm [shape: f32[16,128], index: 4, kind: output, shape index: {}]
  %s5 = sld [smem:[#allocation0]]
  $region26: #{tpu_custom_call.1} parent=0
    _
  %s7 = ssub.s32 1, %s5
  %s8 = scalar_select 0, %s7, %s5
  $region1: #{tpu_custom_call.1} parent=0
    #allocation2 [shape = 'u8[8192]{0}', space=vmem, size = 0x2000, scoped, tag = 'output window, operand 0, single buffered']
    #allocation3 [shape = 's32[1]{0}', space=sflag, size = 0x4, scoped, tag = 'scoped memory for tpu_custom_call.1']
    %9 = vsyncpa [#allocation3], 0
    // Predicated region
    $region2: #{tpu_custom_call.1} parent=1 // pred_check
      _
    $region3: #{tpu_custom_call.1} parent=1 // pred_check_branch
      %11 = sbr.rel (0) target = $region5
    $region4: #{tpu_custom_call.1} parent=1 // pred_region
      _
    $region5: #{tpu_custom_call.1} parent=1 // pred_fallthru
      _
    // Predicated region
    $region6: #{tpu_custom_call.1} parent=1 // pred_check
      _
    $region7: #{tpu_custom_call.1} parent=1 // pred_check_branch
      %13 = sbr.rel (0) target = $region9
    $region8: #{tpu_custom_call.1} parent=1 // pred_region
      _
    $region9: #{tpu_custom_call.1} parent=1 // pred_fallthru
      _
    // Predicated region
    $region10: #{tpu_custom_call.1} parent=1 // pred_check
      _
    $region11: #{tpu_custom_call.1} parent=1 // pred_check_branch
      %15 = sbr.rel (0) target = $region13
    $region12: #{tpu_custom_call.1} parent=1 // pred_region
      _
    $region13: #{tpu_custom_call.1} parent=1 // pred_fallthru
      _
    // Predicated region
    $region14: #{tpu_custom_call.1} parent=1 // pred_check
      _
    $region15: #{tpu_custom_call.1} parent=1 // pred_check_branch
      %17 = sbr.rel (0) target = $region17
    $region16: #{tpu_custom_call.1} parent=1 // pred_region
      _
    $region17: #{tpu_custom_call.1} parent=1 // pred_fallthru
      _
    %v19 = vld [vmem:[%s1] sm:$0xf]
    %v20 = vld [vmem:[%s1 + $0x4] sm:$0xf]
    %v21 = vld [vmem:[%s2] sm:$0x3]
    %v24 = vunpack.c.l.b16 %v19
    %v25 = vunpack.c.l.b16 %v20
    %v26 = vpack.c.b16 %v25, %v24
    %vm27 = vcmask 31744
    %v29 = vsel %vm27, %v26, 0
    %vm31 = vcmask 1041408
    %v33 = vsel %vm31, %v21, 0
    %35 = vmatprep.subr.bf16.mxu0 0
    %36 = vmatpush1.bf16.msra.mxu0 %v33
    %37 = vmatprep.subr.bf16.mxu0 0
    %38 = vmatpush1.bf16.msra.mxu0 0
    %39 = vmatprep.subr.bf16.mxu0 0
    %40 = vmatpush1.bf16.msra.mxu0 0
    %41 = vmatprep.subr.bf16.mxu0 0
    %42 = vmatpush1.bf16.msra.mxu0 0
    %43 = vmatprep.subr.bf16.mxu0 0
    %44 = vmatpush1.bf16.msra.mxu0 0
    %45 = vmatprep.subr.bf16.mxu0 0
    %46 = vmatpush1.bf16.msra.mxu0 0
    %47 = vmatprep.subr.bf16.mxu0 0
    %48 = vmatpush1.bf16.msra.mxu0 0
    %49 = vmatprep.subr.bf16.mxu0 0
    %50 = vmatpush1.bf16.msra.mxu0 0
    %51 = vmatprep.subr.bf16.mxu0 0
    %52 = vmatpush1.bf16.msra.mxu0 0
    %53 = vmatprep.subr.bf16.mxu0 0
    %54 = vmatpush1.bf16.msra.mxu0 0
    %55 = vmatprep.subr.bf16.mxu0 0
    %56 = vmatpush1.bf16.msra.mxu0 0
    %57 = vmatprep.subr.bf16.mxu0 0
    %58 = vmatpush1.bf16.msra.mxu0 0
    %59 = vmatprep.subr.bf16.mxu0 0
    %60 = vmatpush1.bf16.msra.mxu0 0
    %61 = vmatprep.subr.bf16.mxu0 0
    %62 = vmatpush1.bf16.msra.mxu0 0
    %63 = vmatprep.subr.bf16.mxu0 0
    %64 = vmatpush1.bf16.msra.mxu0 0
    %65 = vmatprep.subr.bf16.mxu0 0
    %66 = vmatpush1.bf16.msra.mxu0 0
    %67 = vmatprep.mubr.bf16.mxu0 0
    %68 = vmatmul.mubr.bf16.gmra.mrb[0].mxu0 %v29
    %v69 = vpop.f32.mrb[0].mxu0
    %v70 = vadd.f32 0.0, %v69
    %v71 = vpop.f32.mrb[0].mxu0
    %v72 = vpop.f32.mrb[0].mxu0
    %v73 = vadd.f32 0.0, %v72
    %v74 = vpop.f32.mrb[0].mxu0
    %75 = vdwg.mxu0
    %v76 = vld [vmem:[%s0] sm:$0xf]
    %v77 = vld [vmem:[%s0 + $0x4] sm:$0xf]
    %v78 = vpack.c.bf16 %v73, %v70
    %v79 = vld [vmem:[%s3] sm:$0x1]
    %v81 = vlaneseq
    %v82 = vshrl.u32 %v81, 7
    %v83 = vsub.s32 0, %v82
    %v84 = vrot.slane %v79, %v83
    %v88 = vunpack.c.l.b16 %v76
    %v89 = vunpack.c.l.b16 %v77
    %v90 = vpack.c.b16 %v89, %v88
    %vm91 = vcmask 130048
    %v93 = vsel %vm91, %v90, 0
    %95 = vmatprep.subr.bf16.mxu0 0
    %96 = vmatpush1.bf16.msra.mxu0 %v78
    %97 = vmatprep.subr.bf16.mxu0 0
    %98 = vmatpush1.bf16.msra.mxu0 0
    %99 = vmatprep.subr.bf16.mxu0 0
    %100 = vmatpush1.bf16.msra.mxu0 0
    %101 = vmatprep.subr.bf16.mxu0 0
    %102 = vmatpush1.bf16.msra.mxu0 0
    %103 = vmatprep.subr.bf16.mxu0 0
    %104 = vmatpush1.bf16.msra.mxu0 0
    %105 = vmatprep.subr.bf16.mxu0 0
    %106 = vmatpush1.bf16.msra.mxu0 0
    %107 = vmatprep.subr.bf16.mxu0 0
    %108 = vmatpush1.bf16.msra.mxu0 0
    %109 = vmatprep.subr.bf16.mxu0 0
    %110 = vmatpush1.bf16.msra.mxu0 0
    %111 = vmatprep.subr.bf16.mxu0 0
    %112 = vmatpush1.bf16.msra.mxu0 0
    %113 = vmatprep.subr.bf16.mxu0 0
    %114 = vmatpush1.bf16.msra.mxu0 0
    %115 = vmatprep.subr.bf16.mxu0 0
    %116 = vmatpush1.bf16.msra.mxu0 0
    %117 = vmatprep.subr.bf16.mxu0 0
    %118 = vmatpush1.bf16.msra.mxu0 0
    %119 = vmatprep.subr.bf16.mxu0 0
    %120 = vmatpush1.bf16.msra.mxu0 0
    %121 = vmatprep.subr.bf16.mxu0 0
    %122 = vmatpush1.bf16.msra.mxu0 0
    %123 = vmatprep.subr.bf16.mxu0 0
    %124 = vmatpush1.bf16.msra.mxu0 0
    %125 = vmatprep.subr.bf16.mxu0 0
    %126 = vmatpush1.bf16.msra.mxu0 0
    %127 = vmatprep.mubr.bf16.mxu0 0
    %128 = vmatmul.mubr.bf16.gmra.mrb[0].mxu0 %v93
    %v129 = vpop.f32.mrb[0].mxu0
    %v130 = vadd.f32 %v84, %v129
    %v131 = vpop.f32.mrb[0].mxu0
    %v132 = vpop.f32.mrb[0].mxu0
    %v133 = vadd.f32 %v84, %v132
    %v134 = vpop.f32.mrb[0].mxu0
    %135 = vdwg.mxu0
    %v136 = vmax.f32 %v130, 0.0
    %v137 = vmax.f32 %v133, 0.0
    %138 = vst [vmem:[#allocation2] sm:$0xff] %v136
    %139 = vst [vmem:[#allocation2 + $0x8] sm:$0xff] %v137
    // Predicated region
    $region18: #{tpu_custom_call.1} parent=1 // pred_check
      _
    $region19: #{tpu_custom_call.1} parent=1 // pred_check_branch
      %141 = sbr.rel (0) target = $region21
    $region20: #{tpu_custom_call.1} parent=1 // pred_region
      %s143 = ssub.s32 256, 256
      %144 = vsyncadd [#allocation3], %s143
      %s145 = sshll.u32 [#allocation2], 4
      %s146 = int_to_ptr.vmem [resolvable:$true] %s145
      %151 = dma.vmem_to_hbm [thread:$0]  %s146, 256, %s4, [#allocation3], 128, 128, 8
    $region21: #{tpu_custom_call.1} parent=1 // pred_fallthru
      _
    // Predicated region
    $region22: #{tpu_custom_call.1} parent=1 // pred_check
      _
    $region23: #{tpu_custom_call.1} parent=1 // pred_check_branch
      %153 = sbr.rel (0) target = $region25
    $region24: #{tpu_custom_call.1} parent=1 // pred_region
      %154 = dma.done [#allocation3], 256
    $region25: #{tpu_custom_call.1} parent=1 // pred_fallthru
      _
    %155 = vsyncpa [#allocation3], 1

</llo_original>
